<compile_context>
chip_gen: v7x
topology: tpu7x:2x2x1
jax: 0.10.0
libtpu: 0.0.40
codegen_flags: <defaults>
</compile_context>

<pallas_src>
import functools

import jax
import jax.numpy as jnp
from jax.experimental import pallas as pl
from jax.experimental.pallas import tpu as pltpu


def _lr_kernel(rows_ref, cols_ref, lt_ref, r_ref, o_ref):
    # rows_ref, cols_ref: (1, TB) int32   -- batch tile of query indices
    # lt_ref: (k, n) f32  (L transposed, resident in VMEM across grid steps)
    # r_ref : (k, m) f32  (R, resident in VMEM across grid steps)
    # o_ref : (1, TB) f32 -- lane-dense output tile
    n = lt_ref.shape[1]
    m = r_ref.shape[1]
    tb = rows_ref.shape[1]

    rows = rows_ref[...]  # (1, TB) int32
    cols = cols_ref[...]  # (1, TB) int32

    # One-hot selection matrices built on the VPU (iota + compare).
    rowsel = (jax.lax.broadcasted_iota(jnp.int32, (n, tb), 0) == rows
              ).astype(jnp.float32)                       # (n, TB)
    colsel = (jax.lax.broadcasted_iota(jnp.int32, (m, tb), 0) == cols
              ).astype(jnp.float32)                       # (m, TB)

    # Fused gather on the MXU: Lg[k, i] = L[rows[i], k], Rg[k, i] = R[k, cols[i]].
    lg = jnp.dot(lt_ref[...], rowsel, preferred_element_type=jnp.float32)  # (k, TB)
    rg = jnp.dot(r_ref[...], colsel, preferred_element_type=jnp.float32)   # (k, TB)

    # Elementwise product + reduce over the rank dim (sublanes) -> lane-dense row.
    o_ref[...] = jnp.sum(lg * rg, axis=0, keepdims=True)


@functools.partial(jax.jit, static_argnames=("tile_b",))
def lr_forward(L, R, rows, cols, tile_b=None):
    """Compute out[i] = sum_k L[rows[i], k] * R[k, cols[i]]."""
    n, k = L.shape
    k2, m = R.shape
    assert k == k2
    B = rows.shape[0]

    # This fused path keeps both factors whole in VMEM.
    # TODO(synk): for very large n/m (factors >> VMEM) fall back to a streaming
    # wrapper-side gather path with large lane tiles instead of in-kernel one-hots.
    assert (n * k + k * m) * 4 <= 8 * 1024 * 1024, "factors too large for fused path"

    if tile_b is None:
        # Large lane tiles for HBM efficiency, but keep >= 2 grid steps so the
        # parallel axis can shard across both TensorCores on v7x.  Cap at 2048
        # to stay well inside v7x's smaller (64 MiB / 32 MiB scoped) VMEM.
        tile_b = max(128, min(2048, 128 * pl.cdiv(pl.cdiv(B, 2), 128)))

    grid_len = pl.cdiv(B, tile_b)
    B_pad = grid_len * tile_b
    pad = B_pad - B

    rows_p = jnp.pad(rows.astype(jnp.int32), (0, pad)).reshape(1, B_pad)
    cols_p = jnp.pad(cols.astype(jnp.int32), (0, pad)).reshape(1, B_pad)
    LT = L.T  # (k, n): tiny one-time transpose of the factor, no per-query cost.

    out = pl.pallas_call(
        _lr_kernel,
        out_shape=jax.ShapeDtypeStruct((1, B_pad), jnp.float32),
        grid_spec=pltpu.PrefetchScalarGridSpec(
            num_scalar_prefetch=0,
            grid=(grid_len,),
            in_specs=[
                pl.BlockSpec((1, tile_b), lambda i: (0, i)),  # rows tile
                pl.BlockSpec((1, tile_b), lambda i: (0, i)),  # cols tile
                pl.BlockSpec((k, n), lambda i: (0, 0)),       # L.T, VMEM-resident
                pl.BlockSpec((k, m), lambda i: (0, 0)),       # R,   VMEM-resident
            ],
            out_specs=pl.BlockSpec((1, tile_b), lambda i: (0, i)),
        ),
        compiler_params=pltpu.CompilerParams(
            dimension_semantics=("parallel",)),
    )(rows_p, cols_p, LT, R)
    return out[0, :B]


if __name__ == "__main__":
    # Deterministic parameter / input construction (synthetic, no checkpoint).
    n, m, k = 64, 48, 32
    scale = 1.0
    B = 256  # number of (row, col) queries

    key = jax.random.PRNGKey(0)
    kL, kR, krow, kcol = jax.random.split(key, 4)

    L = scale * jax.random.normal(kL, (n, k), dtype=jnp.float32)
    R = scale * jax.random.normal(kR, (k, m), dtype=jnp.float32)
    rows = jax.random.randint(krow, (B,), 0, n, dtype=jnp.int32)
    cols = jax.random.randint(kcol, (B,), 0, m, dtype=jnp.int32)

    out = lr_forward(L, R, rows, cols)
    out = jax.block_until_ready(out)

    # Pure-JAX reference (mirrors the PyTorch forward exactly).
    ref = jnp.sum(L[rows, :] * R[:, cols].T, axis=-1)

    assert out.shape == (B,)
    assert jnp.allclose(out, ref, atol=1e-4, rtol=1e-4), "mismatch vs reference"
    print("KERNEL_OK")
</pallas_src>

<mosaic_0001>
module attributes {stable_mosaic.version = 11 : i64} {
  func.func @_lr_kernel(%arg0: i32, %arg1: memref<1x128xi32, #tpu.memory_space<vmem>>, %arg2: memref<1x128xi32, #tpu.memory_space<vmem>>, %arg3: memref<32x64xf32, #tpu.memory_space<vmem>>, %arg4: memref<32x48xf32, #tpu.memory_space<vmem>>, %arg5: memref<1x128xf32, #tpu.memory_space<vmem>>) attributes {dimension_semantics = [#tpu.dimension_semantics<parallel>], iteration_bounds = array<i64: 2>, scalar_prefetch = 0 : i64, scratch_operands = 0 : i64, tpu.core_type = #tpu.core_type<tc>, window_params = [{transform_indices = @transform_0, window_bounds = array<i64: 1, 128>}, {transform_indices = @transform_1, window_bounds = array<i64: 1, 128>}, {pipeline_mode = #tpu.pipeline_mode<synchronous>, transform_indices = @transform_2, window_bounds = array<i64: 32, 64>}, {pipeline_mode = #tpu.pipeline_mode<synchronous>, transform_indices = @transform_3, window_bounds = array<i64: 32, 48>}, {transform_indices = @transform_4, window_bounds = array<i64: 1, 128>}]} {
    %c0 = arith.constant 0 : index
    %c0_0 = arith.constant 0 : index
    %0 = vector.load %arg1[%c0, %c0_0] : memref<1x128xi32, #tpu.memory_space<vmem>>, vector<1x128xi32>
    %c0_1 = arith.constant 0 : index
    %c0_2 = arith.constant 0 : index
    %1 = vector.load %arg2[%c0_1, %c0_2] : memref<1x128xi32, #tpu.memory_space<vmem>>, vector<1x128xi32>
    %2 = tpu.iota {dimensions = array<i32: 0>} : vector<64x128xi32>
    %3 = vector.broadcast %0 : vector<1x128xi32> to vector<64x128xi32>
    %4 = arith.cmpi eq, %2, %3 : vector<64x128xi32>
    %5 = arith.extui %4 : vector<64x128xi1> to vector<64x128xi32>
    %6 = arith.sitofp %5 : vector<64x128xi32> to vector<64x128xf32>
    %7 = tpu.iota {dimensions = array<i32: 0>} : vector<48x128xi32>
    %8 = vector.broadcast %1 : vector<1x128xi32> to vector<48x128xi32>
    %9 = arith.cmpi eq, %7, %8 : vector<48x128xi32>
    %10 = arith.extui %9 : vector<48x128xi1> to vector<48x128xi32>
    %11 = arith.sitofp %10 : vector<48x128xi32> to vector<48x128xf32>
    %c0_3 = arith.constant 0 : index
    %c0_4 = arith.constant 0 : index
    %12 = vector.load %arg3[%c0_3, %c0_4] : memref<32x64xf32, #tpu.memory_space<vmem>>, vector<32x64xf32>
    %cst = arith.constant dense<0.000000e+00> : vector<32x128xf32>
    %13 = tpu.matmul %12, %6, %cst {dimension_numbers = #tpu.dot_dimension_numbers<[1], [0], [0], [1], [0, 0, 1, 1], [], []>} : vector<32x64xf32>, vector<64x128xf32>, vector<32x128xf32> -> vector<32x128xf32>
    %c0_5 = arith.constant 0 : index
    %c0_6 = arith.constant 0 : index
    %14 = vector.load %arg4[%c0_5, %c0_6] : memref<32x48xf32, #tpu.memory_space<vmem>>, vector<32x48xf32>
    %cst_7 = arith.constant dense<0.000000e+00> : vector<32x128xf32>
    %15 = tpu.matmul %14, %11, %cst_7 {dimension_numbers = #tpu.dot_dimension_numbers<[1], [0], [0], [1], [0, 0, 1, 1], [], []>} : vector<32x48xf32>, vector<48x128xf32>, vector<32x128xf32> -> vector<32x128xf32>
    %16 = arith.mulf %13, %15 : vector<32x128xf32>
    %cst_8 = arith.constant dense<0.000000e+00> : vector<128xf32>
    %17 = vector.multi_reduction <add>, %16, %cst_8 [0] : vector<32x128xf32> to vector<128xf32>
    %18 = vector.shape_cast %17 : vector<128xf32> to vector<1x128xf32>
    %c0_9 = arith.constant 0 : index
    %c0_10 = arith.constant 0 : index
    %19 = vector.load %arg5[%c0_9, %c0_10] : memref<1x128xf32, #tpu.memory_space<vmem>>, vector<1x128xf32>
    tpu.vector_store %arg5[%c0_9, %c0_10], %18 {strides = array<i32>} : memref<1x128xf32, #tpu.memory_space<vmem>>, vector<1x128xf32>,
    return
  }
  func.func @transform_0(%arg0: i32) -> (i32, i32) {
    %c0_i32 = arith.constant 0 : i32
    %c0_i32_0 = arith.constant 0 : i32
    return %c0_i32, %arg0 : i32, i32
  }
  func.func @transform_1(%arg0: i32) -> (i32, i32) {
    %c0_i32 = arith.constant 0 : i32
    %c0_i32_0 = arith.constant 0 : i32
    return %c0_i32, %arg0 : i32, i32
  }
  func.func @transform_2(%arg0: i32) -> (i32, i32) {
    %c0_i32 = arith.constant 0 : i32
    %c0_i32_0 = arith.constant 0 : i32
    %c0_i32_1 = arith.constant 0 : i32
    return %c0_i32, %c0_i32_0 : i32, i32
  }
  func.func @transform_3(%arg0: i32) -> (i32, i32) {
    %c0_i32 = arith.constant 0 : i32
    %c0_i32_0 = arith.constant 0 : i32
    %c0_i32_1 = arith.constant 0 : i32
    return %c0_i32, %c0_i32_0 : i32, i32
  }
  func.func @transform_4(%arg0: i32) -> (i32, i32) {
    %c0_i32 = arith.constant 0 : i32
    %c0_i32_0 = arith.constant 0 : i32
    return %c0_i32, %arg0 : i32, i32
  }
}

</mosaic_0001>

<llo_original>
// kernel: lr_forward.1
$region0: #{lr_forward.1}
  #allocation0 [shape = 'u32[]', space=smem, size = 0x4, offset = 0x4, fixed_abs, tag = 'smem constant byte address 0x4 - core index']
  #allocation1 [shape = 'u32[144,128]{1,0:T(1,128)}', space=vmem, size = 0x12000, scoped, tag = 'internal scratch']
  %s0 = inlined_call_operand.vmem [shape: s32[1,256], index: 0, kind: input, shape index: {}]
  %s1 = inlined_call_operand.vmem [shape: s32[1,256], index: 1, kind: input, shape index: {}]
  %s2 = inlined_call_operand.hbm [shape: f32[32,64], index: 2, kind: input, shape index: {}]
  %s3 = inlined_call_operand.hbm [shape: f32[32,48], index: 3, kind: input, shape index: {}]
  %s4 = inlined_call_operand.hbm [shape: f32[1,256], index: 4, kind: output, shape index: {}]
  %s5 = sld [smem:[#allocation0]]
  $region57: #{lr_forward.1} parent=0
    _
  %s7 = ssub.s32 1, %s5
  %s8 = scalar_select 0, %s7, %s5
  $region1: #{lr_forward.1} parent=0
    #allocation2 [shape = 'u8[16384]{0}', space=vmem, size = 0x4000, scoped, tag = 'input window, operand 2, single buffered']
    #allocation3 [shape = 's32[2]{0}', space=sflag, size = 0x8, scoped, tag = 'scoped memory for lr_forward.1']
    #allocation4 [shape = 's32[2]{0}', space=sflag, size = 0x8, scoped, tag = 'scoped memory for lr_forward.1']
    #allocation5 [shape = 'u8[16384]{0}', space=vmem, size = 0x4000, scoped, tag = 'input window, operand 3, single buffered']
    #allocation6 [shape = 's32[1]{0}', space=sflag, size = 0x4, scoped, tag = 'scoped memory for lr_forward.1']
    #allocation7 [shape = 'u8[1024]{0}', space=vmem, size = 0x400, scoped, tag = 'output window, operand 0']
    %9 = vsyncpa [#allocation3], 0
    %10 = vsyncpa [#allocation6], 0
    %11 = vsyncpa [#allocation4], 0
    %s12 = scalar_lea.sflag [#allocation4], 1
    %13 = vsyncpa %s12, 0
    loop: start=0, step=1, limit=4
    $region2: #{lr_forward.1} parent=1 // loop_pre_header
      _
    $region3: #{lr_forward.1} parent=1 // loop_header
      %s15 = sphi 0, %s19
      %p16 = scmp.ge.s32.totalorder %s15, 4
      %s25 = sphi 0, %s27
      %s28 = sphi 0, %s25
      %s29 = sphi 0, %s28
      %s45 = sphi 0, %s29
      %s51 = sphi 0, %s53
      %s54 = sphi 0, %s51
      %s55 = sphi 0, %s54
      %s71 = sphi 0, %s55
      %s75 = sphi 0, %s75
      %s77 = sphi 0, %s75
      %s78 = sphi 0, %s77
      %s92 = sphi 0, %s78
      %s96 = sphi 0, %s96
      %s98 = sphi 0, %s96
      %s99 = sphi 0, %s98
      %s113 = sphi 0, %s99
      %s119 = sphi 0, %s121
      %s122 = sphi 0, %s119
      %s123 = sphi 0, %s122
      %s139 = sphi 0, %s123
    $region4: #{lr_forward.1} parent=1 // loop_header_branch
      %18 = sbr.rel (%p16) target = $region8
    $region5: #{lr_forward.1} parent=1 // loop_body
      %s20 = ssub.s32 %s15, 1
      %s21 = ssub.s32 %s15, 2
      %s22 = sadd.s32 %s15, 1
      %s23 = ssub.s32 %s15, %s22
      %p24 = scmp.eq.s32.totalorder %s23, 0
      %s26 = sadd.s32 %s25, 1
      %s27 = scalar_select %p24, %s25, %s26
      %p30 = pneg %p24
      %p31 = scmp.eq.s32.totalorder %s15, 1
      %p32 = por %p30, %p31
      %p33 = scmp.ne.s32.totalorder %s25, %s28
      %p34 = scmp.eq.s32.totalorder %s15, 0
      %p35 = por %p33, %p34
      %p36 = scmp.ne.s32.totalorder %s25, %s28
      %p37 = scmp.eq.s32.totalorder %s20, 1
      %p38 = por %p36, %p37
      %p39 = scmp.ne.s32.totalorder %s28, %s29
      %p40 = scmp.eq.s32.totalorder %s20, 0
      %p41 = por %p39, %p40
      %p42 = scmp.ne.s32.totalorder %s28, %s29
      %p43 = scmp.eq.s32.totalorder %s21, 1
      %p44 = por %p42, %p43
      %p46 = scmp.ne.s32.totalorder %s29, %s45
      %p47 = scmp.eq.s32.totalorder %s21, 0
      %p48 = por %p46, %p47
      %s49 = ssub.s32 %s15, %s22
      %p50 = scmp.eq.s32.totalorder %s49, 0
      %s52 = sadd.s32 %s51, 1
      %s53 = scalar_select %p50, %s51, %s52
      %p56 = pneg %p50
      %p57 = scmp.eq.s32.totalorder %s15, 1
      %p58 = por %p56, %p57
      %p59 = scmp.ne.s32.totalorder %s51, %s54
      %p60 = scmp.eq.s32.totalorder %s15, 0
      %p61 = por %p59, %p60
      %p62 = scmp.ne.s32.totalorder %s51, %s54
      %p63 = scmp.eq.s32.totalorder %s20, 1
      %p64 = por %p62, %p63
      %p65 = scmp.ne.s32.totalorder %s54, %s55
      %p66 = scmp.eq.s32.totalorder %s20, 0
      %p67 = por %p65, %p66
      %p68 = scmp.ne.s32.totalorder %s54, %s55
      %p69 = scmp.eq.s32.totalorder %s21, 1
      %p70 = por %p68, %p69
      %p72 = scmp.ne.s32.totalorder %s55, %s71
      %p73 = scmp.eq.s32.totalorder %s21, 0
      %p74 = por %p72, %p73
      %s76 = sadd.s32 %s75, 1
      %p79 = scmp.eq.s32.totalorder %s15, 1
      %p80 = scmp.ne.s32.totalorder %s75, %s77
      %p81 = scmp.eq.s32.totalorder %s15, 0
      %p82 = por %p80, %p81
      %p83 = scmp.ne.s32.totalorder %s75, %s77
      %p84 = scmp.eq.s32.totalorder %s20, 1
      %p85 = por %p83, %p84
      %p86 = scmp.ne.s32.totalorder %s77, %s78
      %p87 = scmp.eq.s32.totalorder %s20, 0
      %p88 = por %p86, %p87
      %p89 = scmp.ne.s32.totalorder %s77, %s78
      %p90 = scmp.eq.s32.totalorder %s21, 1
      %p91 = por %p89, %p90
      %p93 = scmp.ne.s32.totalorder %s78, %s92
      %p94 = scmp.eq.s32.totalorder %s21, 0
      %p95 = por %p93, %p94
      %s97 = sadd.s32 %s96, 1
      %p100 = scmp.eq.s32.totalorder %s15, 1
      %p101 = scmp.ne.s32.totalorder %s96, %s98
      %p102 = scmp.eq.s32.totalorder %s15, 0
      %p103 = por %p101, %p102
      %p104 = scmp.ne.s32.totalorder %s96, %s98
      %p105 = scmp.eq.s32.totalorder %s20, 1
      %p106 = por %p104, %p105
      %p107 = scmp.ne.s32.totalorder %s98, %s99
      %p108 = scmp.eq.s32.totalorder %s20, 0
      %p109 = por %p107, %p108
      %p110 = scmp.ne.s32.totalorder %s98, %s99
      %p111 = scmp.eq.s32.totalorder %s21, 1
      %p112 = por %p110, %p111
      %p114 = scmp.ne.s32.totalorder %s99, %s113
      %p115 = scmp.eq.s32.totalorder %s21, 0
      %p116 = por %p114, %p115
      %s117 = ssub.s32 %s15, %s22
      %p118 = scmp.eq.s32.totalorder %s117, 0
      %s120 = sadd.s32 %s119, 1
      %s121 = scalar_select %p118, %s119, %s120
      %p124 = pneg %p118
      %p125 = scmp.eq.s32.totalorder %s15, 1
      %p126 = por %p124, %p125
      %p127 = scmp.ne.s32.totalorder %s119, %s122
      %p128 = scmp.eq.s32.totalorder %s15, 0
      %p129 = por %p127, %p128
      %p130 = scmp.ne.s32.totalorder %s119, %s122
      %p131 = scmp.eq.s32.totalorder %s20, 1
      %p132 = por %p130, %p131
      %p133 = scmp.ne.s32.totalorder %s122, %s123
      %p134 = scmp.eq.s32.totalorder %s20, 0
      %p135 = por %p133, %p134
      %p136 = scmp.ne.s32.totalorder %s122, %s123
      %p137 = scmp.eq.s32.totalorder %s21, 1
      %p138 = por %p136, %p137
      %p140 = scmp.ne.s32.totalorder %s123, %s139
      %p141 = scmp.eq.s32.totalorder %s21, 0
      %p142 = por %p140, %p141
      %p143 = scmp.le.s32.totalorder 1, %s15
      %p144 = scmp.lt.s32.totalorder %s15, 3
      %p145 = pnand %p143, %p144
      %p146 = pneg %p145
      // Predicated region
      $region9: #{lr_forward.1} parent=5 // pred_check
        _
      $region10: #{lr_forward.1} parent=5 // pred_check_branch
        %148 = sbr.rel (%p145) target = $region12
      $region11: #{lr_forward.1} parent=5 // pred_region
        %s149 = ssub.s32 %s15, 1
        // Predicated region
        $region13: #{lr_forward.1} parent=11 // pred_check
          %p150 = pneg %p88
        $region14: #{lr_forward.1} parent=11 // pred_check_branch
          %152 = sbr.rel (%p150) target = $region16
        $region15: #{lr_forward.1} parent=11 // pred_region
          %s154 = ssub.s32 512, 512
          %155 = vsyncadd [#allocation3], %s154
          %s156 = sshll.u32 [#allocation2], 4
          %s157 = int_to_ptr.vmem [resolvable:$true] %s156
          %162 = dma.hbm_to_vmem [thread:$0]  %s2, 512, %s157, [#allocation3], 128, 128, 8
        $region16: #{lr_forward.1} parent=11 // pred_fallthru
          _
        // Predicated region
        $region17: #{lr_forward.1} parent=11 // pred_check
          %p163 = pneg %p109
        $region18: #{lr_forward.1} parent=11 // pred_check_branch
          %165 = sbr.rel (%p163) target = $region20
        $region19: #{lr_forward.1} parent=11 // pred_region
          %s167 = ssub.s32 512, 512
          %168 = vsyncadd [#allocation6], %s167
          %s169 = sshll.u32 [#allocation5], 4
          %s170 = int_to_ptr.vmem [resolvable:$true] %s169
          %175 = dma.hbm_to_vmem [thread:$0]  %s3, 512, %s170, [#allocation6], 128, 128, 8
        $region20: #{lr_forward.1} parent=11 // pred_fallthru
          _
      $region12: #{lr_forward.1} parent=5 // pred_fallthru
        _
      %p176 = scmp.lt.s32.totalorder %s15, 2
      // Predicated region
      $region21: #{lr_forward.1} parent=5 // pred_check
        %p177 = pneg %p176
      $region22: #{lr_forward.1} parent=5 // pred_check_branch
        %179 = sbr.rel (%p177) target = $region24
      $region23: #{lr_forward.1} parent=5 // pred_region
        // Predicated region
        $region25: #{lr_forward.1} parent=23 // pred_check
          %p180 = pneg %p35
        $region26: #{lr_forward.1} parent=23 // pred_check_branch
          %182 = sbr.rel (%p180) target = $region28
        $region27: #{lr_forward.1} parent=23 // pred_region
          %p183 = scmp.lt.s32.totalorder %s15, 1
          %s184 = scalar_select %p183, %s15, 1
          %s185 = scalar_lea.vmem %s0, %s184
        $region28: #{lr_forward.1} parent=23 // pred_fallthru
          _
        // Predicated region
        $region29: #{lr_forward.1} parent=23 // pred_check
          %p186 = pneg %p61
        $region30: #{lr_forward.1} parent=23 // pred_check_branch
          %188 = sbr.rel (%p186) target = $region32
        $region31: #{lr_forward.1} parent=23 // pred_region
          %p189 = scmp.lt.s32.totalorder %s15, 1
          %s190 = scalar_select %p189, %s15, 1
          %s191 = scalar_lea.vmem %s1, %s190
        $region32: #{lr_forward.1} parent=23 // pred_fallthru
          _
      $region24: #{lr_forward.1} parent=5 // pred_fallthru
        _
      %p192 = scmp.le.s32.totalorder 1, %s15
      %p193 = scmp.lt.s32.totalorder %s15, 3
      %p194 = pnand %p192, %p193
      %p195 = pneg %p194
      // Predicated region
      $region33: #{lr_forward.1} parent=5 // pred_check
        _
      $region34: #{lr_forward.1} parent=5 // pred_check_branch
        %197 = sbr.rel (%p194) target = $region36
      $region35: #{lr_forward.1} parent=5 // pred_region
        %s198 = ssub.s32 %s15, 1
        // Predicated region
        $region37: #{lr_forward.1} parent=35 // pred_check
          %p199 = pneg %p88
        $region38: #{lr_forward.1} parent=35 // pred_check_branch
          %201 = sbr.rel (%p199) target = $region40
        $region39: #{lr_forward.1} parent=35 // pred_region
          %202 = dma.done [#allocation3], 512
        $region40: #{lr_forward.1} parent=35 // pred_fallthru
          _
        // Predicated region
        $region41: #{lr_forward.1} parent=35 // pred_check
          %p203 = pneg %p109
        $region42: #{lr_forward.1} parent=35 // pred_check_branch
          %205 = sbr.rel (%p203) target = $region44
        $region43: #{lr_forward.1} parent=35 // pred_region
          %206 = dma.done [#allocation6], 512
        $region44: #{lr_forward.1} parent=35 // pred_fallthru
          _
        %p207 = scmp.lt.s32.totalorder %s20, 1
        %s208 = scalar_select %p207, %s20, 1
        %s209 = scalar_lea.vmem %s0, %s208
        %p210 = pneg %p41
        %p211 = pneg %p38
        %p212 = scmp.lt.s32.totalorder %s20, 1
        %s213 = scalar_select %p212, %s20, 1
        %s214 = scalar_lea.vmem %s1, %s213
        %p215 = pneg %p67
        %p216 = pneg %p64
        %p217 = pneg %p88
        %p218 = pneg %p85
        %p219 = pneg %p109
        %p220 = pneg %p106
        %p221 = pneg %p135
        %p222 = pneg %p132
        %s223 = sand.u32 %s122, 1
        %s224 = scalar_lea.sflag [#allocation4], %s223
        %s225 = sand.u32 %s122, 1
        %s226 = scalar_lea.vmem [#allocation7], %s225
        %p227 = scmp.lt.s32.totalorder %s20, 1
        %s228 = scalar_select %p227, %s20, 1
        %s229 = scalar_lea.vmem %s0, %s228
        %p230 = scmp.lt.s32.totalorder %s20, 1
        %s231 = scalar_select %p230, %s20, 1
        %s232 = scalar_lea.vmem %s1, %s231
        %v233 = vld [vmem:[%s229] sm:$0x1]
        %v234 = vld [vmem:[%s232] sm:$0x1]
        %v235 = vlaneseq
        %v236 = vshrl.u32 %v235, 7
        %v237 = vadd.s32 %v236, 8
        %v238 = vadd.s32 %v236, 16
        %v239 = vadd.s32 %v236, 24
        %v240 = vadd.s32 %v236, 32
        %v241 = vadd.s32 %v236, 40
        %v242 = vadd.s32 %v236, 48
        %v243 = vadd.s32 %v236, 56
        %v244 = vlaneseq
        %v245 = vshrl.u32 %v244, 7
        %v246 = vsub.s32 0, %v245
        %v247 = vrot.slane %v233, %v246
        %vm248 = vcmp.eq.s32.totalorder %v236, %v247
        %vm249 = vcmp.eq.s32.totalorder %v237, %v247
        %vm250 = vcmp.eq.s32.totalorder %v238, %v247
        %vm251 = vcmp.eq.s32.totalorder %v239, %v247
        %vm252 = vcmp.eq.s32.totalorder %v240, %v247
        %vm253 = vcmp.eq.s32.totalorder %v241, %v247
        %vm254 = vcmp.eq.s32.totalorder %v242, %v247
        %vm255 = vcmp.eq.s32.totalorder %v243, %v247
        %v256 = vsel %vm248, 1, 0
        %v257 = vsel %vm249, 1, 0
        %v258 = vsel %vm250, 1, 0
        %v259 = vsel %vm251, 1, 0
        %v260 = vsel %vm252, 1, 0
        %v261 = vsel %vm253, 1, 0
        %v262 = vsel %vm254, 1, 0
        %v263 = vsel %vm255, 1, 0
        %v264 = vcvt.s32.f32 %v256
        %v265 = vcvt.s32.f32 %v257
        %v266 = vcvt.s32.f32 %v258
        %v267 = vcvt.s32.f32 %v259
        %v268 = vcvt.s32.f32 %v260
        %v269 = vcvt.s32.f32 %v261
        %v270 = vcvt.s32.f32 %v262
        %v271 = vcvt.s32.f32 %v263
        %v272 = vlaneseq
        %v273 = vshrl.u32 %v272, 7
        %v274 = vsub.s32 0, %v273
        %v275 = vrot.slane %v234, %v274
        %vm276 = vcmp.eq.s32.totalorder %v236, %v275
        %vm277 = vcmp.eq.s32.totalorder %v237, %v275
        %vm278 = vcmp.eq.s32.totalorder %v238, %v275
        %vm279 = vcmp.eq.s32.totalorder %v239, %v275
        %vm280 = vcmp.eq.s32.totalorder %v240, %v275
        %vm281 = vcmp.eq.s32.totalorder %v241, %v275
        %v282 = vsel %vm276, 1, 0
        %v283 = vsel %vm277, 1, 0
        %v284 = vsel %vm278, 1, 0
        %v285 = vsel %vm279, 1, 0
        %v286 = vsel %vm280, 1, 0
        %v287 = vsel %vm281, 1, 0
        %v288 = vcvt.s32.f32 %v282
        %v289 = vcvt.s32.f32 %v283
        %v290 = vcvt.s32.f32 %v284
        %v291 = vcvt.s32.f32 %v285
        %v292 = vcvt.s32.f32 %v286
        %v293 = vcvt.s32.f32 %v287
        %v294 = vld [vmem:[#allocation2] sm:$0xff]
        %v295 = vld [vmem:[#allocation2 + $0x8] sm:$0xff]
        %v296 = vld [vmem:[#allocation2 + $0x10] sm:$0xff]
        %v297 = vld [vmem:[#allocation2 + $0x18] sm:$0xff]
        %vm298 = vcmask 523264
        %v300 = vsel %vm298, %v294, 0
        %v303 = vsel %vm298, %v295, 0
        %v306 = vsel %vm298, %v296, 0
        %v309 = vsel %vm298, %v297, 0
        %311 = vmatprep.subr.mxu0 0.0
        %312 = vmatpush1.msra.mxu0 %v264
        %313 = vmatprep.subr.mxu0 0.0
        %314 = vmatpush1.msra.mxu0 %v265
        %315 = vmatprep.subr.mxu0 0.0
        %316 = vmatpush1.msra.mxu0 %v266
        %317 = vmatprep.subr.mxu0 0.0
        %318 = vmatpush1.msra.mxu0 %v267
        %319 = vmatprep.subr.mxu0 0.0
        %320 = vmatpush1.msra.mxu0 %v268
        %321 = vmatprep.subr.mxu0 0.0
        %322 = vmatpush1.msra.mxu0 %v269
        %323 = vmatprep.subr.mxu0 0.0
        %324 = vmatpush1.msra.mxu0 %v270
        %325 = vmatprep.subr.mxu0 0.0
        %326 = vmatpush1.msra.mxu0 %v271
        %327 = vmatprep.subr.mxu0 0.0
        %328 = vmatpush1.msra.mxu0 0.0
        %329 = vmatprep.subr.mxu0 0.0
        %330 = vmatpush1.msra.mxu0 0.0
        %331 = vmatprep.subr.mxu0 0.0
        %332 = vmatpush1.msra.mxu0 0.0
        %333 = vmatprep.subr.mxu0 0.0
        %334 = vmatpush1.msra.mxu0 0.0
        %335 = vmatprep.subr.mxu0 0.0
        %336 = vmatpush1.msra.mxu0 0.0
        %337 = vmatprep.subr.mxu0 0.0
        %338 = vmatpush1.msra.mxu0 0.0
        %339 = vmatprep.subr.mxu0 0.0
        %340 = vmatpush1.msra.mxu0 0.0
        %341 = vmatprep.subr.mxu0 0.0
        %342 = vmatpush1.msra.mxu0 0.0
        %343 = vmatprep.subr.mxu0 0.0
        %344 = vmatpush1.msra.mxu0 0.0
        %345 = vmatprep.subr.mxu0 0.0
        %346 = vmatpush1.msra.mxu0 0.0
        %347 = vmatprep.subr.mxu0 0.0
        %348 = vmatpush1.msra.mxu0 0.0
        %349 = vmatprep.subr.mxu0 0.0
        %350 = vmatpush1.msra.mxu0 0.0
        %351 = vmatprep.subr.mxu0 0.0
        %352 = vmatpush1.msra.mxu0 0.0
        %353 = vmatprep.subr.mxu0 0.0
        %354 = vmatpush1.msra.mxu0 0.0
        %355 = vmatprep.subr.mxu0 0.0
        %356 = vmatpush1.msra.mxu0 0.0
        %357 = vmatprep.subr.mxu0 0.0
        %358 = vmatpush1.msra.mxu0 0.0
        %359 = vmatprep.subr.mxu0 0.0
        %360 = vmatpush1.msra.mxu0 0.0
        %361 = vmatprep.subr.mxu0 0.0
        %362 = vmatpush1.msra.mxu0 0.0
        %363 = vmatprep.subr.mxu0 0.0
        %364 = vmatpush1.msra.mxu0 0.0
        %365 = vmatprep.subr.mxu0 0.0
        %366 = vmatpush1.msra.mxu0 0.0
        %367 = vmatprep.subr.mxu0 0.0
        %368 = vmatpush1.msra.mxu0 0.0
        %369 = vmatprep.subr.mxu0 0.0
        %370 = vmatpush1.msra.mxu0 0.0
        %371 = vmatprep.subr.mxu0 0.0
        %372 = vmatpush1.msra.mxu0 0.0
        %373 = vmatprep.subr.mxu0 0.0
        %374 = vmatpush1.msra.mxu0 0.0
        %375 = vmatprep.mubr.f32.mxu0 0.0
        %376 = vmatmul.mubr.f32.gmra.mrb[0].mxu0 %v300
        %v377 = vpop.f32.mrb[0].mxu0
        %v378 = vadd.f32 0.0, %v377
        %v379 = vpop.f32.mrb[0].mxu0
        %380 = vmatprep.mubr.f32.mxu0 0.0
        %381 = vmatmul.mubr.f32.gmra.mrb[0].mxu0 %v303
        %v382 = vpop.f32.mrb[0].mxu0
        %v383 = vadd.f32 0.0, %v382
        %v384 = vpop.f32.mrb[0].mxu0
        %385 = vmatprep.mubr.f32.mxu0 0.0
        %386 = vmatmul.mubr.f32.gmra.mrb[0].mxu0 %v306
        %v387 = vpop.f32.mrb[0].mxu0
        %v388 = vadd.f32 0.0, %v387
        %v389 = vpop.f32.mrb[0].mxu0
        %390 = vmatprep.mubr.f32.mxu0 0.0
        %391 = vmatmul.mubr.f32.gmra.mrb[0].mxu0 %v309
        %v392 = vpop.f32.mrb[0].mxu0
        %v393 = vadd.f32 0.0, %v392
        %v394 = vpop.f32.mrb[0].mxu0
        %395 = vdwg.mxu0
        %v396 = vld [vmem:[#allocation5] sm:$0xff]
        %v397 = vld [vmem:[#allocation5 + $0x8] sm:$0xff]
        %v398 = vld [vmem:[#allocation5 + $0x10] sm:$0xff]
        %v399 = vld [vmem:[#allocation5 + $0x18] sm:$0xff]
        %vm400 = vcmask 392192
        %v402 = vsel %vm400, %v396, 0
        %v405 = vsel %vm400, %v397, 0
        %v408 = vsel %vm400, %v398, 0
        %v411 = vsel %vm400, %v399, 0
        %413 = vmatprep.subr.mxu0 0.0
        %414 = vmatpush1.msra.mxu0 %v288
        %415 = vmatprep.subr.mxu0 0.0
        %416 = vmatpush1.msra.mxu0 %v289
        %417 = vmatprep.subr.mxu0 0.0
        %418 = vmatpush1.msra.mxu0 %v290
        %419 = vmatprep.subr.mxu0 0.0
        %420 = vmatpush1.msra.mxu0 %v291
        %421 = vmatprep.subr.mxu0 0.0
        %422 = vmatpush1.msra.mxu0 %v292
        %423 = vmatprep.subr.mxu0 0.0
        %424 = vmatpush1.msra.mxu0 %v293
        %425 = vmatprep.subr.mxu0 0.0
        %426 = vmatpush1.msra.mxu0 0.0
        %427 = vmatprep.subr.mxu0 0.0
        %428 = vmatpush1.msra.mxu0 0.0
        %429 = vmatprep.subr.mxu0 0.0
        %430 = vmatpush1.msra.mxu0 0.0
        %431 = vmatprep.subr.mxu0 0.0
        %432 = vmatpush1.msra.mxu0 0.0
        %433 = vmatprep.subr.mxu0 0.0
        %434 = vmatpush1.msra.mxu0 0.0
        %435 = vmatprep.subr.mxu0 0.0
        %436 = vmatpush1.msra.mxu0 0.0
        %437 = vmatprep.subr.mxu0 0.0
        %438 = vmatpush1.msra.mxu0 0.0
        %439 = vmatprep.subr.mxu0 0.0
        %440 = vmatpush1.msra.mxu0 0.0
        %441 = vmatprep.subr.mxu0 0.0
        %442 = vmatpush1.msra.mxu0 0.0
        %443 = vmatprep.subr.mxu0 0.0
        %444 = vmatpush1.msra.mxu0 0.0
        %445 = vmatprep.subr.mxu0 0.0
        %446 = vmatpush1.msra.mxu0 0.0
        %447 = vmatprep.subr.mxu0 0.0
        %448 = vmatpush1.msra.mxu0 0.0
        %449 = vmatprep.subr.mxu0 0.0
        %450 = vmatpush1.msra.mxu0 0.0
        %451 = vmatprep.subr.mxu0 0.0
        %452 = vmatpush1.msra.mxu0 0.0
        %453 = vmatprep.subr.mxu0 0.0
        %454 = vmatpush1.msra.mxu0 0.0
        %455 = vmatprep.subr.mxu0 0.0
        %456 = vmatpush1.msra.mxu0 0.0
        %457 = vmatprep.subr.mxu0 0.0
        %458 = vmatpush1.msra.mxu0 0.0
        %459 = vmatprep.subr.mxu0 0.0
        %460 = vmatpush1.msra.mxu0 0.0
        %461 = vmatprep.subr.mxu0 0.0
        %462 = vmatpush1.msra.mxu0 0.0
        %463 = vmatprep.subr.mxu0 0.0
        %464 = vmatpush1.msra.mxu0 0.0
        %465 = vmatprep.subr.mxu0 0.0
        %466 = vmatpush1.msra.mxu0 0.0
        %467 = vmatprep.subr.mxu0 0.0
        %468 = vmatpush1.msra.mxu0 0.0
        %469 = vmatprep.subr.mxu0 0.0
        %470 = vmatpush1.msra.mxu0 0.0
        %471 = vmatprep.subr.mxu0 0.0
        %472 = vmatpush1.msra.mxu0 0.0
        %473 = vmatprep.subr.mxu0 0.0
        %474 = vmatpush1.msra.mxu0 0.0
        %475 = vmatprep.subr.mxu0 0.0
        %476 = vmatpush1.msra.mxu0 0.0
        %477 = vmatprep.mubr.f32.mxu0 0.0
        %478 = vmatmul.mubr.f32.gmra.mrb[0].mxu0 %v402
        %v479 = vpop.f32.mrb[0].mxu0
        %v480 = vadd.f32 0.0, %v479
        %v481 = vpop.f32.mrb[0].mxu0
        %482 = vmatprep.mubr.f32.mxu0 0.0
        %483 = vmatmul.mubr.f32.gmra.mrb[0].mxu0 %v405
        %v484 = vpop.f32.mrb[0].mxu0
        %v485 = vadd.f32 0.0, %v484
        %v486 = vpop.f32.mrb[0].mxu0
        %487 = vmatprep.mubr.f32.mxu0 0.0
        %488 = vmatmul.mubr.f32.gmra.mrb[0].mxu0 %v408
        %v489 = vpop.f32.mrb[0].mxu0
        %v490 = vadd.f32 0.0, %v489
        %v491 = vpop.f32.mrb[0].mxu0
        %492 = vmatprep.mubr.f32.mxu0 0.0
        %493 = vmatmul.mubr.f32.gmra.mrb[0].mxu0 %v411
        %v494 = vpop.f32.mrb[0].mxu0
        %v495 = vadd.f32 0.0, %v494
        %v496 = vpop.f32.mrb[0].mxu0
        %497 = vdwg.mxu0
        %v498 = vmul.f32 %v378, %v480
        %v499 = vmul.f32 %v383, %v485
        %v500 = vmul.f32 %v388, %v490
        %v501 = vmul.f32 %v393, %v495
        %v502 = vadd.f32 %v498, %v499
        %v503 = vadd.f32 %v502, %v500
        %v504 = vadd.f32 %v503, %v501
        %v505 = vrot.slane %v504, 4
        %v506 = vadd.f32 %v504, %v505
        %v507 = vrot.slane %v506, 2
        %v508 = vadd.f32 %v506, %v507
        %v509 = vrot.slane %v508, 1
        %v510 = vadd.f32 %v508, %v509
        %511 = vst [vmem:[%s226] sm:$0x1] %v510
        %s512 = sand.u32 %s122, 1
        %s513 = scalar_lea.sflag [#allocation4], %s512
        %s514 = sand.u32 %s122, 1
        %s515 = scalar_lea.vmem [#allocation7], %s514
        // Predicated region
        $region45: #{lr_forward.1} parent=35 // pred_check
          %p516 = pneg %p132
        $region46: #{lr_forward.1} parent=35 // pred_check_branch
          %518 = sbr.rel (%p516) target = $region48
        $region47: #{lr_forward.1} parent=35 // pred_region
          %s520 = ssub.s32 16, 16
          %521 = vsyncadd %s513, %s520
          %s522 = smul.addr %s20, 16
          %s523 = scalar_lea.hbm %s4, %s522
          %s525 = sshll.u32 %s515, 4
          %s526 = int_to_ptr.vmem [resolvable:$true] %s525
          %528 = dma.vmem_to_hbm [thread:$0]  %s526, 16, %s523, %s513
        $region48: #{lr_forward.1} parent=35 // pred_fallthru
          _
      $region36: #{lr_forward.1} parent=5 // pred_fallthru
        _
      %p529 = scmp.le.s32.totalorder 2, %s15
      // Predicated region
      $region49: #{lr_forward.1} parent=5 // pred_check
        %p530 = pneg %p529
      $region50: #{lr_forward.1} parent=5 // pred_check_branch
        %532 = sbr.rel (%p530) target = $region52
      $region51: #{lr_forward.1} parent=5 // pred_region
        %s533 = ssub.s32 %s15, 2
        // Predicated region
        $region53: #{lr_forward.1} parent=51 // pred_check
          %p534 = pneg %p138
        $region54: #{lr_forward.1} parent=51 // pred_check_branch
          %536 = sbr.rel (%p534) target = $region56
        $region55: #{lr_forward.1} parent=51 // pred_region
          %s537 = sand.u32 %s123, 1
          %s538 = scalar_lea.sflag [#allocation4], %s537
          %s539 = sand.u32 %s123, 1
          %s540 = scalar_lea.vmem [#allocation7], %s539
          %541 = dma.done %s538, 16
        $region56: #{lr_forward.1} parent=51 // pred_fallthru
          _
      $region52: #{lr_forward.1} parent=5 // pred_fallthru
        _
    $region6: #{lr_forward.1} parent=1 // loop_footer
      %s19 = sadd.s32 1, %s15
    $region7: #{lr_forward.1} parent=1 // loop_footer_branch
      %14 = sbr.rel target = $region3
    $region8: #{lr_forward.1} parent=1 // loop_exit
      _
    %542 = vsyncpa [#allocation3], 1
    %s543 = scalar_lea.sflag [#allocation3], 1
    %544 = vsyncpa %s543, 1
    %545 = vsyncpa [#allocation6], 1
    %546 = vsyncpa [#allocation4], 1
    %s547 = scalar_lea.sflag [#allocation4], 1
    %548 = vsyncpa %s547, 1

</llo_original>
